<compile_context>
chip_gen: v7x
topology: tpu7x:2x2x1
jax: 0.10.0
libtpu: 0.0.40
codegen_flags: <defaults>
</compile_context>

<pallas_src>
import functools

import jax
import jax.numpy as jnp
from jax.experimental import pallas as pl
from jax.experimental.pallas import tpu as pltpu


def _hybrid_loss_kernel(y_ref, gt_ref, out_ref, prev_row_ref, *,
                        use_spatial, use_spectral, needs_h_halo,
                        abs_scale, h_scale, w_scale, c_scale):
    j = pl.program_id(1)  # H-tile index (reduction axis, iterated last)

    # Zero the VMEM-resident per-batch accumulator (and the halo-row carrier)
    # at the first reduction step of every batch.
    @pl.when(j == 0)
    def _():
        out_ref[...] = jnp.zeros_like(out_ref)
        if needs_h_halo:
            prev_row_ref[...] = jnp.zeros_like(prev_row_ref)

    y = y_ref[0].astype(jnp.float32)   # (C, TH, W)
    g = gt_ref[0].astype(jnp.float32)  # (C, TH, W)
    C, TH, W = y.shape

    # L1 fidelity: sum|y - gt| over this tile, pre-scaled by 1/numel.
    contrib = abs_scale * jnp.sum(jnp.abs(y - g))

    if use_spatial:
        # Within-tile forward differences along H (sublanes) and W (lanes).
        dh = y[:, 1:, :] - y[:, :-1, :]
        dw = y[:, :, 1:] - y[:, :, :-1]
        contrib = contrib + h_scale * jnp.sum(dh * dh) + w_scale * jnp.sum(dw * dw)

        if needs_h_halo:
            # Cross-tile H difference: first row of this tile vs. last row of
            # the previous tile, carried in VMEM scratch (no extra DMA). The
            # j == 0 term is dropped by the select, so the tiled result equals
            # the untiled reference.
            bd = y[:, 0, :] - prev_row_ref[...]
            contrib = contrib + jnp.where(j > 0, h_scale * jnp.sum(bd * bd), 0.0)
            # Carry this tile's last row for the next grid step of this batch.
            prev_row_ref[...] = y[:, TH - 1, :]

    if use_spectral:
        # Full channel axis is resident in the tile; a major-axis slice does
        # not shift lanes/sublanes, so it is cheap.
        dc = y[1:, :, :] - y[:-1, :, :]
        contrib = contrib + c_scale * jnp.sum(dc * dc)

    # Single accumulator update per grid step (lane-broadcast scalar add).
    out_ref[...] += contrib


def _pick_tile_h(C, H, W, itemsize, target_bytes=1 << 20):
    """Largest tile height (multiple of 8, or full H) dividing H whose
    (C, TH, W) input tile stays under `target_bytes`."""
    valid = [d for d in range(1, H + 1) if H % d == 0 and (d == H or d % 8 == 0)]
    fitting = [d for d in valid if C * d * W * itemsize <= target_bytes]
    return max(fitting) if fitting else min(valid)


def hybrid_loss(y, gt, *, lamd=0.1, spatial_tv=False, spectral_tv=False,
                tile_h=None):
    """JAX/Pallas equivalent of HybridLoss(lamd, spatial_tv, spectral_tv)(y, gt)."""
    # NOTE: `lamd` is stored but never used in the PyTorch forward; kept for parity.
    del lamd
    assert y.shape == gt.shape and y.ndim == 4
    B, C, H, W = y.shape
    use_spatial = bool(spatial_tv)
    use_spectral = bool(spectral_tv)

    if tile_h is None:
        tile_h = _pick_tile_h(C, H, W, y.dtype.itemsize)
    assert H % tile_h == 0 and (tile_h % 8 == 0 or tile_h == H), (
        "tile_h must divide H and be a multiple of 8 (or the full H)")
    num_h_tiles = H // tile_h

    # Fold all normalizations / weights (L1 mean, TV counts, TV weights, 1/B)
    # into trace-time constants -> no runtime divides in the kernel.
    abs_scale = 1.0 / float(B * C * H * W)
    h_scale = 0.001 / (float(B) * C * (H - 1) * W) if use_spatial else 0.0
    w_scale = 0.001 / (float(B) * C * H * (W - 1)) if use_spatial else 0.0
    c_scale = 2.0 * 0.001 / (float(B) * (C - 1) * H * W) if use_spectral else 0.0

    kernel = functools.partial(
        _hybrid_loss_kernel,
        use_spatial=use_spatial,
        use_spectral=use_spectral,
        needs_h_halo=use_spatial and num_h_tiles > 1,
        abs_scale=abs_scale, h_scale=h_scale, w_scale=w_scale, c_scale=c_scale)

    # VMEM budget: 2 inputs x 2 pipeline buffers x tile + in-kernel f32
    # temporaries; keep headroom under the smallest scoped limits (v5e/v7x).
    in_tile_bytes = C * tile_h * W * y.dtype.itemsize
    f32_tile_bytes = C * tile_h * W * 4
    vmem_limit = int(min(64 << 20,
                         max(32 << 20,
                             4 * in_tile_bytes + 8 * f32_tile_bytes + (2 << 20))))

    n_elem = B * C * H * W
    flops = n_elem * (4 + (6 if use_spatial else 0) + (3 if use_spectral else 0))
    cost = pl.CostEstimate(flops=int(flops), transcendentals=0,
                           bytes_accessed=int(y.nbytes + gt.nbytes + B * 128 * 4))

    grid_spec = pltpu.PrefetchScalarGridSpec(
        num_scalar_prefetch=0,
        grid=(B, num_h_tiles),
        in_specs=[
            pl.BlockSpec((1, C, tile_h, W), lambda b, j: (b, 0, j, 0)),
            pl.BlockSpec((1, C, tile_h, W), lambda b, j: (b, 0, j, 0)),
        ],
        # Lane-dense per-batch partial, resident across the reduction axis and
        # written back to HBM only once per batch.
        out_specs=pl.BlockSpec((1, 1, 128), lambda b, j: (b, 0, 0)),
        scratch_shapes=[pltpu.VMEM((C, W), jnp.float32)],  # carried halo row
    )

    partials = pl.pallas_call(
        kernel,
        out_shape=jax.ShapeDtypeStruct((B, 1, 128), jnp.float32),
        grid_spec=grid_spec,
        compiler_params=pltpu.CompilerParams(
            dimension_semantics=("parallel", "arbitrary"),
            vmem_limit_bytes=vmem_limit),
        cost_estimate=cost,
    )(y, gt)

    # Every lane of a per-batch partial holds the same value; reduce over B.
    return jnp.sum(partials[:, 0, 0])


def _reference_hybrid_loss(y, gt, *, spatial_tv=False, spectral_tv=False):
    """Pure-JAX reference mirroring the PyTorch module, for validation."""
    y = y.astype(jnp.float32)
    gt = gt.astype(jnp.float32)
    B, C, H, W = y.shape
    total = jnp.mean(jnp.abs(y - gt))
    if spatial_tv:
        h_tv = jnp.sum((y[:, :, 1:, :] - y[:, :, :-1, :]) ** 2)
        w_tv = jnp.sum((y[:, :, :, 1:] - y[:, :, :, :-1]) ** 2)
        count_h = C * (H - 1) * W
        count_w = C * H * (W - 1)
        total = total + 0.001 * (h_tv / count_h + w_tv / count_w) / B
    if spectral_tv:
        c_tv = jnp.sum((y[:, 1:, :, :] - y[:, :-1, :, :]) ** 2)
        count_c = (C - 1) * H * W
        total = total + 0.001 * 2.0 * (c_tv / count_c) / B
    return total


if __name__ == "__main__":
    key = jax.random.PRNGKey(0)
    ky, kgt = jax.random.split(key)
    B, C, H, W = 2, 4, 16, 16
    y = jax.random.normal(ky, (B, C, H, W), dtype=jnp.float32)
    gt = jax.random.normal(kgt, (B, C, H, W), dtype=jnp.float32)

    # All branches on, tiled along H (exercises the cross-tile halo carry).
    out = jax.block_until_ready(
        hybrid_loss(y, gt, lamd=0.1, spatial_tv=True, spectral_tv=True, tile_h=8))
    ref = _reference_hybrid_loss(y, gt, spatial_tv=True, spectral_tv=True)
    assert jnp.allclose(out, ref, rtol=1e-5, atol=1e-6), (out, ref)

    # Same configuration with auto-selected tile height (single H tile here).
    out_auto = jax.block_until_ready(
        hybrid_loss(y, gt, spatial_tv=True, spectral_tv=True))
    assert jnp.allclose(out_auto, ref, rtol=1e-5, atol=1e-6), (out_auto, ref)

    # Spectral-only branch, tiled.
    out_spec = jax.block_until_ready(hybrid_loss(y, gt, spectral_tv=True, tile_h=8))
    ref_spec = _reference_hybrid_loss(y, gt, spectral_tv=True)
    assert jnp.allclose(out_spec, ref_spec, rtol=1e-5, atol=1e-6), (out_spec, ref_spec)

    # Default configuration: pure L1 loss.
    out_default = jax.block_until_ready(hybrid_loss(y, gt))
    ref_default = _reference_hybrid_loss(y, gt)
    assert jnp.allclose(out_default, ref_default, rtol=1e-5, atol=1e-6)

    # bf16 inputs streamed without wrapper pre-cast (upcast happens in-register).
    out_bf16 = jax.block_until_ready(
        hybrid_loss(y.astype(jnp.bfloat16), gt.astype(jnp.bfloat16),
                    spatial_tv=True, spectral_tv=True, tile_h=8))
    ref_bf16 = _reference_hybrid_loss(y.astype(jnp.bfloat16), gt.astype(jnp.bfloat16),
                                      spatial_tv=True, spectral_tv=True)
    assert jnp.allclose(out_bf16, ref_bf16, rtol=1e-2, atol=1e-3), (out_bf16, ref_bf16)

    print("KERNEL_OK")
</pallas_src>

<mosaic_0001>
module attributes {stable_mosaic.version = 11 : i64} {
  func.func @_hybrid_loss_kernel(%arg0: i32, %arg1: i32, %arg2: memref<1x4x8x16xf32, #tpu.memory_space<vmem>>, %arg3: memref<1x4x8x16xf32, #tpu.memory_space<vmem>>, %arg4: memref<1x1x128xf32, #tpu.memory_space<vmem>>, %arg5: memref<4x16xf32, #tpu.memory_space<vmem>>) attributes {dimension_semantics = [#tpu.dimension_semantics<parallel>, #tpu.dimension_semantics<arbitrary>], iteration_bounds = array<i64: 2, 2>, scalar_prefetch = 0 : i64, scratch_operands = 1 : i64, tpu.core_type = #tpu.core_type<tc>, window_params = [{transform_indices = @transform_0, window_bounds = array<i64: 1, 4, 8, 16>}, {transform_indices = @transform_1, window_bounds = array<i64: 1, 4, 8, 16>}, {transform_indices = @transform_2, window_bounds = array<i64: 1, 1, 128>}]} {
    %c0_i32 = arith.constant 0 : i32
    %0 = arith.cmpi eq, %arg1, %c0_i32 : i32
    %1 = arith.extui %0 : i1 to i32
    %c0_i32_0 = arith.constant 0 : i32
    %2 = arith.cmpi ne, %1, %c0_i32_0 : i32
    scf.if %2 {
      %cst_29 = arith.constant 0.000000e+00 : f32
      %64 = vector.broadcast %cst_29 : f32 to vector<1x1x128xf32>
      %c0_30 = arith.constant 0 : index
      %c0_31 = arith.constant 0 : index
      %c0_32 = arith.constant 0 : index
      %65 = vector.load %arg4[%c0_30, %c0_31, %c0_32] : memref<1x1x128xf32, #tpu.memory_space<vmem>>, vector<1x1x128xf32>
      tpu.vector_store %arg4[%c0_30, %c0_31, %c0_32], %64 {strides = array<i32>} : memref<1x1x128xf32, #tpu.memory_space<vmem>>, vector<1x1x128xf32>,
      %cst_33 = arith.constant 0.000000e+00 : f32
      %66 = vector.broadcast %cst_33 : f32 to vector<4x16xf32>
      %c0_34 = arith.constant 0 : index
      %c0_35 = arith.constant 0 : index
      %67 = vector.load %arg5[%c0_34, %c0_35] : memref<4x16xf32, #tpu.memory_space<vmem>>, vector<4x16xf32>
      tpu.vector_store %arg5[%c0_34, %c0_35], %66 {strides = array<i32>} : memref<4x16xf32, #tpu.memory_space<vmem>>, vector<4x16xf32>,
    } else {
    }
    %c0 = arith.constant 0 : index
    %c0_1 = arith.constant 0 : index
    %c0_2 = arith.constant 0 : index
    %c0_3 = arith.constant 0 : index
    %3 = vector.load %arg2[%c0, %c0_1, %c0_2, %c0_3] : memref<1x4x8x16xf32, #tpu.memory_space<vmem>>, vector<1x4x8x16xf32>
    %4 = vector.shape_cast %3 : vector<1x4x8x16xf32> to vector<4x8x16xf32>
    %c0_4 = arith.constant 0 : index
    %c0_5 = arith.constant 0 : index
    %c0_6 = arith.constant 0 : index
    %c0_7 = arith.constant 0 : index
    %5 = vector.load %arg3[%c0_4, %c0_5, %c0_6, %c0_7] : memref<1x4x8x16xf32, #tpu.memory_space<vmem>>, vector<1x4x8x16xf32>
    %6 = vector.shape_cast %5 : vector<1x4x8x16xf32> to vector<4x8x16xf32>
    %7 = arith.subf %4, %6 : vector<4x8x16xf32>
    %8 = math.absf %7 : vector<4x8x16xf32>
    %9 = vector.shape_cast %8 : vector<4x8x16xf32> to vector<1x4x8x16xf32>
    %cst = arith.constant dense<0.000000e+00> : vector<1xf32>
    %10 = vector.multi_reduction <add>, %9, %cst [1, 2, 3] : vector<1x4x8x16xf32> to vector<1xf32>
    %11 = vector.shape_cast %10 : vector<1xf32> to vector<1x1x1x1xf32>
    %12 = vector.extract %11[0, 0, 0, 0] : f32 from vector<1x1x1x1xf32>
    %cst_8 = arith.constant 4.8828125E-4 : f32
    %13 = arith.mulf %cst_8, %12 : f32
    %14 = vector.extract_strided_slice %4 {offsets = [0, 1, 0], sizes = [4, 7, 16], strides = [1, 1, 1]} : vector<4x8x16xf32> to vector<4x7x16xf32>
    %15 = vector.extract_strided_slice %4 {offsets = [0, 0, 0], sizes = [4, 7, 16], strides = [1, 1, 1]} : vector<4x8x16xf32> to vector<4x7x16xf32>
    %16 = arith.subf %14, %15 : vector<4x7x16xf32>
    %17 = vector.extract_strided_slice %4 {offsets = [0, 0, 1], sizes = [4, 8, 15], strides = [1, 1, 1]} : vector<4x8x16xf32> to vector<4x8x15xf32>
    %18 = vector.extract_strided_slice %4 {offsets = [0, 0, 0], sizes = [4, 8, 15], strides = [1, 1, 1]} : vector<4x8x16xf32> to vector<4x8x15xf32>
    %19 = arith.subf %17, %18 : vector<4x8x15xf32>
    %20 = arith.mulf %16, %16 : vector<4x7x16xf32>
    %21 = vector.shape_cast %20 : vector<4x7x16xf32> to vector<1x4x7x16xf32>
    %cst_9 = arith.constant dense<0.000000e+00> : vector<1xf32>
    %22 = vector.multi_reduction <add>, %21, %cst_9 [1, 2, 3] : vector<1x4x7x16xf32> to vector<1xf32>
    %23 = vector.shape_cast %22 : vector<1xf32> to vector<1x1x1x1xf32>
    %24 = vector.extract %23[0, 0, 0, 0] : f32 from vector<1x1x1x1xf32>
    %cst_10 = arith.constant 5.20833339E-7 : f32
    %25 = arith.mulf %cst_10, %24 : f32
    %26 = arith.addf %13, %25 : f32
    %27 = arith.mulf %19, %19 : vector<4x8x15xf32>
    %28 = vector.shape_cast %27 : vector<4x8x15xf32> to vector<1x4x8x15xf32>
    %cst_11 = arith.constant dense<0.000000e+00> : vector<1xf32>
    %29 = vector.multi_reduction <add>, %28, %cst_11 [1, 2, 3] : vector<1x4x8x15xf32> to vector<1xf32>
    %30 = vector.shape_cast %29 : vector<1xf32> to vector<1x1x1x1xf32>
    %31 = vector.extract %30[0, 0, 0, 0] : f32 from vector<1x1x1x1xf32>
    %cst_12 = arith.constant 5.20833339E-7 : f32
    %32 = arith.mulf %cst_12, %31 : f32
    %33 = arith.addf %26, %32 : f32
    %34 = vector.extract_strided_slice %4 {offsets = [0, 0, 0], sizes = [4, 1, 16], strides = [1, 1, 1]} : vector<4x8x16xf32> to vector<4x1x16xf32>
    %35 = vector.shape_cast %34 : vector<4x1x16xf32> to vector<4x16xf32>
    %c0_13 = arith.constant 0 : index
    %c0_14 = arith.constant 0 : index
    %36 = vector.load %arg5[%c0_13, %c0_14] : memref<4x16xf32, #tpu.memory_space<vmem>>, vector<4x16xf32>
    %37 = arith.subf %35, %36 : vector<4x16xf32>
    %c0_i32_15 = arith.constant 0 : i32
    %38 = arith.cmpi sgt, %arg1, %c0_i32_15 : i32
    %39 = arith.mulf %37, %37 : vector<4x16xf32>
    %40 = vector.shape_cast %39 : vector<4x16xf32> to vector<1x4x16xf32>
    %cst_16 = arith.constant dense<0.000000e+00> : vector<1xf32>
    %41 = vector.multi_reduction <add>, %40, %cst_16 [1, 2] : vector<1x4x16xf32> to vector<1xf32>
    %42 = vector.shape_cast %41 : vector<1xf32> to vector<1x1x1xf32>
    %43 = vector.extract %42[0, 0, 0] : f32 from vector<1x1x1xf32>
    %cst_17 = arith.constant 5.20833339E-7 : f32
    %44 = arith.mulf %cst_17, %43 : f32
    %cst_18 = arith.constant 0.000000e+00 : f32
    %45 = arith.select %38, %44, %cst_18 : f32
    %46 = arith.addf %33, %45 : f32
    %47 = vector.extract_strided_slice %4 {offsets = [0, 7, 0], sizes = [4, 1, 16], strides = [1, 1, 1]} : vector<4x8x16xf32> to vector<4x1x16xf32>
    %48 = vector.shape_cast %47 : vector<4x1x16xf32> to vector<4x16xf32>
    %c0_19 = arith.constant 0 : index
    %c0_20 = arith.constant 0 : index
    %49 = vector.load %arg5[%c0_19, %c0_20] : memref<4x16xf32, #tpu.memory_space<vmem>>, vector<4x16xf32>
    tpu.vector_store %arg5[%c0_19, %c0_20], %48 {strides = array<i32>} : memref<4x16xf32, #tpu.memory_space<vmem>>, vector<4x16xf32>,
    %50 = vector.extract_strided_slice %4 {offsets = [1, 0, 0], sizes = [3, 8, 16], strides = [1, 1, 1]} : vector<4x8x16xf32> to vector<3x8x16xf32>
    %51 = vector.extract_strided_slice %4 {offsets = [0, 0, 0], sizes = [3, 8, 16], strides = [1, 1, 1]} : vector<4x8x16xf32> to vector<3x8x16xf32>
    %52 = arith.subf %50, %51 : vector<3x8x16xf32>
    %53 = arith.mulf %52, %52 : vector<3x8x16xf32>
    %54 = vector.shape_cast %53 : vector<3x8x16xf32> to vector<1x3x8x16xf32>
    %cst_21 = arith.constant dense<0.000000e+00> : vector<1xf32>
    %55 = vector.multi_reduction <add>, %54, %cst_21 [1, 2, 3] : vector<1x3x8x16xf32> to vector<1xf32>
    %56 = vector.shape_cast %55 : vector<1xf32> to vector<1x1x1x1xf32>
    %57 = vector.extract %56[0, 0, 0, 0] : f32 from vector<1x1x1x1xf32>
    %cst_22 = arith.constant 1.30208332E-6 : f32
    %58 = arith.mulf %cst_22, %57 : f32
    %59 = arith.addf %46, %58 : f32
    %c0_23 = arith.constant 0 : index
    %c0_24 = arith.constant 0 : index
    %c0_25 = arith.constant 0 : index
    %60 = vector.load %arg4[%c0_23, %c0_24, %c0_25] : memref<1x1x128xf32, #tpu.memory_space<vmem>>, vector<1x1x128xf32>
    %61 = vector.broadcast %59 : f32 to vector<1x1x128xf32>
    %62 = arith.addf %60, %61 : vector<1x1x128xf32>
    %c0_26 = arith.constant 0 : index
    %c0_27 = arith.constant 0 : index
    %c0_28 = arith.constant 0 : index
    %63 = vector.load %arg4[%c0_26, %c0_27, %c0_28] : memref<1x1x128xf32, #tpu.memory_space<vmem>>, vector<1x1x128xf32>
    tpu.vector_store %arg4[%c0_26, %c0_27, %c0_28], %62 {strides = array<i32>} : memref<1x1x128xf32, #tpu.memory_space<vmem>>, vector<1x1x128xf32>,
    return
  }
  func.func @transform_0(%arg0: i32, %arg1: i32) -> (i32, i32, i32, i32) {
    %c0_i32 = arith.constant 0 : i32
    %c0_i32_0 = arith.constant 0 : i32
    %c0_i32_1 = arith.constant 0 : i32
    return %arg0, %c0_i32, %arg1, %c0_i32_0 : i32, i32, i32, i32
  }
  func.func @transform_1(%arg0: i32, %arg1: i32) -> (i32, i32, i32, i32) {
    %c0_i32 = arith.constant 0 : i32
    %c0_i32_0 = arith.constant 0 : i32
    %c0_i32_1 = arith.constant 0 : i32
    return %arg0, %c0_i32, %arg1, %c0_i32_0 : i32, i32, i32, i32
  }
  func.func @transform_2(%arg0: i32, %arg1: i32) -> (i32, i32, i32) {
    %c0_i32 = arith.constant 0 : i32
    %c0_i32_0 = arith.constant 0 : i32
    %c0_i32_1 = arith.constant 0 : i32
    return %arg0, %c0_i32, %c0_i32_0 : i32, i32, i32
  }
}

</mosaic_0001>

<llo_original>
// kernel: tpu_custom_call.1
$region0: #{tpu_custom_call.1}
  #allocation0 [shape = 'u32[]', space=smem, size = 0x4, offset = 0x4, fixed_abs, tag = 'smem constant byte address 0x4 - core index']
  #allocation1 [shape = 'u32[144,128]{1,0:T(1,128)}', space=vmem, size = 0x12000, scoped, tag = 'internal scratch']
  #allocation2 [shape = 'f32[4,16]{1,0:T(4,128)}', space=vmem, size = 0x800, scoped, tag = 'scratch operand']
  %s0 = inlined_call_operand.hbm [shape: f32[2,4,16,16], index: 0, kind: input, shape index: {}]
  %s1 = inlined_call_operand.hbm [shape: f32[2,4,16,16], index: 1, kind: input, shape index: {}]
  %s2 = inlined_call_operand.hbm [shape: f32[2,1,128], index: 2, kind: output, shape index: {}]
  %s3 = sld [smem:[#allocation0]]
  $region53: #{tpu_custom_call.1} parent=0
    _
  %s5 = ssub.s32 1, %s3
  %s6 = scalar_select 0, %s5, %s3
  $region1: #{tpu_custom_call.1} parent=0
    #allocation3 [shape = 'u8[32768]{0}', space=vmem, size = 0x8000, scoped, tag = 'input window, operand 0']
    #allocation4 [shape = 's32[2]{0}', space=sflag, size = 0x8, scoped, tag = 'scoped memory for tpu_custom_call.1']
    #allocation5 [shape = 's32[2]{0}', space=sflag, size = 0x8, scoped, tag = 'scoped memory for tpu_custom_call.1']
    #allocation6 [shape = 'u8[32768]{0}', space=vmem, size = 0x8000, scoped, tag = 'input window, operand 1']
    #allocation7 [shape = 's32[2]{0}', space=sflag, size = 0x8, scoped, tag = 'scoped memory for tpu_custom_call.1']
    #allocation8 [shape = 'u8[1024]{0}', space=vmem, size = 0x400, scoped, tag = 'output window, operand 0']
    %7 = vsyncpa [#allocation4], 0
    %s8 = scalar_lea.sflag [#allocation4], 1
    %9 = vsyncpa %s8, 0
    %10 = vsyncpa [#allocation7], 0
    %s11 = scalar_lea.sflag [#allocation7], 1
    %12 = vsyncpa %s11, 0
    %13 = vsyncpa [#allocation5], 0
    %s14 = scalar_lea.sflag [#allocation5], 1
    %15 = vsyncpa %s14, 0
    loop: start=0, step=1, limit=6
    $region2: #{tpu_custom_call.1} parent=1 // loop_pre_header
      _
    $region3: #{tpu_custom_call.1} parent=1 // loop_header
      %s17 = sphi 0, %s21
      %p18 = scmp.ge.s32.totalorder %s17, 6
      %s24 = sphi 0, %s36
      %s25 = sphi 0, %s32
      %s26 = sphi 0, %s24
      %s27 = sphi 0, %s25
      %s28 = sphi 0, %s26
      %s29 = sphi 0, %s27
      %s41 = sphi 0, %s43
      %s44 = sphi 0, %s41
      %s45 = sphi 0, %s44
      %s61 = sphi 0, %s45
      %s69 = sphi 0, %s71
      %s72 = sphi 0, %s69
      %s73 = sphi 0, %s72
      %s89 = sphi 0, %s73
      %s95 = sphi 0, %s97
      %s98 = sphi 0, %s95
      %s99 = sphi 0, %s98
      %s115 = sphi 0, %s99
    $region4: #{tpu_custom_call.1} parent=1 // loop_header_branch
      %20 = sbr.rel (%p18) target = $region8
    $region5: #{tpu_custom_call.1} parent=1 // loop_body
      %s22 = ssub.s32 %s17, 1
      %s23 = ssub.s32 %s17, 2
      %s30 = sadd.s32 1, %s25
      %p31 = scmp.ge.s32.totalorder %s30, 2
      %s32 = scalar_select %p31, 0, %s30
      %s33 = sadd.s32 1, %s24
      %s34 = scalar_select %p31, %s33, %s24
      %p35 = scmp.ge.s32.totalorder %s34, 2
      %s36 = scalar_select %p35, 0, %s34
      %s37 = ssub.s32 %s24, %s36
      %s38 = ssub.s32 %s25, %s32
      %s39 = sor.u32 %s37, %s38
      %p40 = scmp.eq.s32.totalorder %s39, 0
      %s42 = sadd.s32 %s41, 1
      %s43 = scalar_select %p40, %s41, %s42
      %p46 = pneg %p40
      %p47 = scmp.eq.s32.totalorder %s17, 3
      %p48 = por %p46, %p47
      %p49 = scmp.ne.s32.totalorder %s41, %s44
      %p50 = scmp.eq.s32.totalorder %s17, 0
      %p51 = por %p49, %p50
      %p52 = scmp.ne.s32.totalorder %s41, %s44
      %p53 = scmp.eq.s32.totalorder %s22, 3
      %p54 = por %p52, %p53
      %p55 = scmp.ne.s32.totalorder %s44, %s45
      %p56 = scmp.eq.s32.totalorder %s22, 0
      %p57 = por %p55, %p56
      %p58 = scmp.ne.s32.totalorder %s44, %s45
      %p59 = scmp.eq.s32.totalorder %s23, 3
      %p60 = por %p58, %p59
      %p62 = scmp.ne.s32.totalorder %s45, %s61
      %p63 = scmp.eq.s32.totalorder %s23, 0
      %p64 = por %p62, %p63
      %s65 = ssub.s32 %s24, %s36
      %s66 = ssub.s32 %s25, %s32
      %s67 = sor.u32 %s65, %s66
      %p68 = scmp.eq.s32.totalorder %s67, 0
      %s70 = sadd.s32 %s69, 1
      %s71 = scalar_select %p68, %s69, %s70
      %p74 = pneg %p68
      %p75 = scmp.eq.s32.totalorder %s17, 3
      %p76 = por %p74, %p75
      %p77 = scmp.ne.s32.totalorder %s69, %s72
      %p78 = scmp.eq.s32.totalorder %s17, 0
      %p79 = por %p77, %p78
      %p80 = scmp.ne.s32.totalorder %s69, %s72
      %p81 = scmp.eq.s32.totalorder %s22, 3
      %p82 = por %p80, %p81
      %p83 = scmp.ne.s32.totalorder %s72, %s73
      %p84 = scmp.eq.s32.totalorder %s22, 0
      %p85 = por %p83, %p84
      %p86 = scmp.ne.s32.totalorder %s72, %s73
      %p87 = scmp.eq.s32.totalorder %s23, 3
      %p88 = por %p86, %p87
      %p90 = scmp.ne.s32.totalorder %s73, %s89
      %p91 = scmp.eq.s32.totalorder %s23, 0
      %p92 = por %p90, %p91
      %s93 = ssub.s32 %s24, %s36
      %p94 = scmp.eq.s32.totalorder %s93, 0
      %s96 = sadd.s32 %s95, 1
      %s97 = scalar_select %p94, %s95, %s96
      %p100 = pneg %p94
      %p101 = scmp.eq.s32.totalorder %s17, 3
      %p102 = por %p100, %p101
      %p103 = scmp.ne.s32.totalorder %s95, %s98
      %p104 = scmp.eq.s32.totalorder %s17, 0
      %p105 = por %p103, %p104
      %p106 = scmp.ne.s32.totalorder %s95, %s98
      %p107 = scmp.eq.s32.totalorder %s22, 3
      %p108 = por %p106, %p107
      %p109 = scmp.ne.s32.totalorder %s98, %s99
      %p110 = scmp.eq.s32.totalorder %s22, 0
      %p111 = por %p109, %p110
      %p112 = scmp.ne.s32.totalorder %s98, %s99
      %p113 = scmp.eq.s32.totalorder %s23, 3
      %p114 = por %p112, %p113
      %p116 = scmp.ne.s32.totalorder %s99, %s115
      %p117 = scmp.eq.s32.totalorder %s23, 0
      %p118 = por %p116, %p117
      %p119 = scmp.le.s32.totalorder 1, %s17
      %p120 = scmp.lt.s32.totalorder %s17, 5
      %p121 = pnand %p119, %p120
      %p122 = pneg %p121
      // Predicated region
      $region9: #{tpu_custom_call.1} parent=5 // pred_check
        _
      $region10: #{tpu_custom_call.1} parent=5 // pred_check_branch
        %124 = sbr.rel (%p121) target = $region12
      $region11: #{tpu_custom_call.1} parent=5 // pred_region
        %s125 = ssub.s32 %s17, 1
      $region12: #{tpu_custom_call.1} parent=5 // pred_fallthru
        _
      %p126 = scmp.lt.s32.totalorder %s17, 4
      // Predicated region
      $region13: #{tpu_custom_call.1} parent=5 // pred_check
        %p127 = pneg %p126
      $region14: #{tpu_custom_call.1} parent=5 // pred_check_branch
        %129 = sbr.rel (%p127) target = $region16
      $region15: #{tpu_custom_call.1} parent=5 // pred_region
        // Predicated region
        $region17: #{tpu_custom_call.1} parent=15 // pred_check
          %p130 = pneg %p51
        $region18: #{tpu_custom_call.1} parent=15 // pred_check_branch
          %132 = sbr.rel (%p130) target = $region20
        $region19: #{tpu_custom_call.1} parent=15 // pred_region
          %s133 = sand.u32 %s41, 1
          %s134 = scalar_lea.sflag [#allocation4], %s133
          %s135 = sand.u32 %s41, 1
          %s136 = smul.addr %s135, 32
          %s137 = scalar_lea.vmem [#allocation3], %s136
          %s139 = ssub.s32 512, 512
          %140 = vsyncadd %s134, %s139
          %s141 = smul.addr %s24, 8
          %s142 = sadd.s32 %s25, %s141
          %s143 = smul.addr %s142, 128
          %s144 = scalar_lea.hbm %s0, %s143
          %s145 = sshll.u32 %s137, 4
          %s146 = int_to_ptr.vmem [resolvable:$true] %s145
          %151 = dma.hbm_to_vmem [thread:$0]  %s144, 512, %s146, %s134, 256, 128, 8
        $region20: #{tpu_custom_call.1} parent=15 // pred_fallthru
          _
        // Predicated region
        $region21: #{tpu_custom_call.1} parent=15 // pred_check
          %p152 = pneg %p79
        $region22: #{tpu_custom_call.1} parent=15 // pred_check_branch
          %154 = sbr.rel (%p152) target = $region24
        $region23: #{tpu_custom_call.1} parent=15 // pred_region
          %s155 = sand.u32 %s69, 1
          %s156 = scalar_lea.sflag [#allocation7], %s155
          %s157 = sand.u32 %s69, 1
          %s158 = smul.addr %s157, 32
          %s159 = scalar_lea.vmem [#allocation6], %s158
          %s161 = ssub.s32 512, 512
          %162 = vsyncadd %s156, %s161
          %s163 = smul.addr %s24, 8
          %s164 = sadd.s32 %s25, %s163
          %s165 = smul.addr %s164, 128
          %s166 = scalar_lea.hbm %s1, %s165
          %s167 = sshll.u32 %s159, 4
          %s168 = int_to_ptr.vmem [resolvable:$true] %s167
          %173 = dma.hbm_to_vmem [thread:$0]  %s166, 512, %s168, %s156, 256, 128, 8
        $region24: #{tpu_custom_call.1} parent=15 // pred_fallthru
          _
      $region16: #{tpu_custom_call.1} parent=5 // pred_fallthru
        _
      %p174 = scmp.le.s32.totalorder 1, %s17
      %p175 = scmp.lt.s32.totalorder %s17, 5
      %p176 = pnand %p174, %p175
      %p177 = pneg %p176
      // Predicated region
      $region25: #{tpu_custom_call.1} parent=5 // pred_check
        _
      $region26: #{tpu_custom_call.1} parent=5 // pred_check_branch
        %179 = sbr.rel (%p176) target = $region28
      $region27: #{tpu_custom_call.1} parent=5 // pred_region
        %s180 = ssub.s32 %s17, 1
        %s181 = sand.u32 %s44, 1
        %s182 = scalar_lea.sflag [#allocation4], %s181
        %s183 = sand.u32 %s44, 1
        %s184 = smul.addr %s183, 32
        %s185 = scalar_lea.vmem [#allocation3], %s184
        // Predicated region
        $region29: #{tpu_custom_call.1} parent=27 // pred_check
          %p186 = pneg %p57
        $region30: #{tpu_custom_call.1} parent=27 // pred_check_branch
          %188 = sbr.rel (%p186) target = $region32
        $region31: #{tpu_custom_call.1} parent=27 // pred_region
          %189 = dma.done %s182, 512
        $region32: #{tpu_custom_call.1} parent=27 // pred_fallthru
          _
        %s190 = sand.u32 %s72, 1
        %s191 = scalar_lea.sflag [#allocation7], %s190
        %s192 = sand.u32 %s72, 1
        %s193 = smul.addr %s192, 32
        %s194 = scalar_lea.vmem [#allocation6], %s193
        // Predicated region
        $region33: #{tpu_custom_call.1} parent=27 // pred_check
          %p195 = pneg %p85
        $region34: #{tpu_custom_call.1} parent=27 // pred_check_branch
          %197 = sbr.rel (%p195) target = $region36
        $region35: #{tpu_custom_call.1} parent=27 // pred_region
          %198 = dma.done %s191, 512
        $region36: #{tpu_custom_call.1} parent=27 // pred_fallthru
          _
        %s199 = sand.u32 %s44, 1
        %s200 = scalar_lea.sflag [#allocation4], %s199
        %s201 = sand.u32 %s44, 1
        %s202 = smul.addr %s201, 32
        %s203 = scalar_lea.vmem [#allocation3], %s202
        %p204 = pneg %p57
        %p205 = pneg %p54
        %s206 = sand.u32 %s72, 1
        %s207 = scalar_lea.sflag [#allocation7], %s206
        %s208 = sand.u32 %s72, 1
        %s209 = smul.addr %s208, 32
        %s210 = scalar_lea.vmem [#allocation6], %s209
        %p211 = pneg %p85
        %p212 = pneg %p82
        %p213 = pneg %p111
        %p214 = pneg %p108
        %s215 = sand.u32 %s98, 1
        %s216 = scalar_lea.sflag [#allocation5], %s215
        %s217 = sand.u32 %s98, 1
        %s218 = scalar_lea.vmem [#allocation8], %s217
        %p219 = scmp.eq.s32.totalorder %s27, 0
        // Predicated region
        $region37: #{tpu_custom_call.1} parent=27 // pred_check
          %p220 = pneg %p219
        $region38: #{tpu_custom_call.1} parent=27 // pred_check_branch
          %222 = sbr.rel (%p220) target = $region40
        $region39: #{tpu_custom_call.1} parent=27 // pred_region
          %223 = vst [vmem:[%s218] sm:$0x1] 0.0
          %vm224 = vcmask 125952
          %225 = vst.msk [vmem:[#allocation2] sm:$0xf] %vm224, 0.0
        $region40: #{tpu_custom_call.1} parent=27 // pred_fallthru
          _
        %v226 = vld [vmem:[%s185] sm:$0xff]
        %v227 = vld [vmem:[%s185 + $0x8] sm:$0xff]
        %v228 = vld [vmem:[%s185 + $0x10] sm:$0xff]
        %v229 = vld [vmem:[%s185 + $0x18] sm:$0xff]
        %v230 = vld [vmem:[%s194] sm:$0xff]
        %v231 = vld [vmem:[%s194 + $0x8] sm:$0xff]
        %v232 = vld [vmem:[%s194 + $0x10] sm:$0xff]
        %v233 = vld [vmem:[%s194 + $0x18] sm:$0xff]
        %v234 = vsub.f32 %v226, %v230
        %v235 = vsub.f32 %v227, %v231
        %v236 = vsub.f32 %v228, %v232
        %v237 = vsub.f32 %v229, %v233
        %v238 = vand.u32 2147483647, %v234
        %v239 = vand.u32 2147483647, %v235
        %v240 = vand.u32 2147483647, %v236
        %v241 = vand.u32 2147483647, %v237
        %vm242 = vcmask 130048
        %v243 = vsel %vm242, %v238, 0.0
        %v244 = vsel %vm242, %v239, 0.0
        %v245 = vadd.f32 %v243, %v244
        %v246 = vsel %vm242, %v240, 0.0
        %v247 = vadd.f32 %v245, %v246
        %v248 = vsel %vm242, %v241, 0.0
        %v249 = vadd.f32 %v247, %v248
        %250 = vadd.xlane.f32.xlu0 %v249
        %v251 = vpop.xlane.xlu0 %250
        %v252 = vrot.slane %v251, 4
        %v253 = vadd.f32 %v251, %v252
        %v254 = vrot.slane %v253, 2
        %v255 = vadd.f32 %v253, %v254
        %v256 = vrot.slane %v255, 1
        %v257 = vadd.f32 %v255, %v256
        %s258 = vtos %v257
        %s259 = smul.f32 %s258, 0.00048828125
        %v264 = vrot.slane %v226, 7
        %v265 = vrot.slane %v227, 7
        %v266 = vrot.slane %v228, 7
        %v267 = vrot.slane %v229, 7
        %v272 = vsub.f32 %v226, %v264
        %v273 = vsub.f32 %v227, %v265
        %v274 = vsub.f32 %v228, %v266
        %v275 = vsub.f32 %v229, %v267
        %276 = vrot.lane.b32.xlu0 %v226, 1
        %v277 = vpop.permute.xlu0 %276
        %278 = vrot.lane.b32.xlu0 %v227, 1
        %v279 = vpop.permute.xlu0 %278
        %280 = vrot.lane.b32.xlu0 %v228, 1
        %v281 = vpop.permute.xlu0 %280
        %282 = vrot.lane.b32.xlu0 %v229, 1
        %v283 = vpop.permute.xlu0 %282
        %v288 = vsub.f32 %v226, %v277
        %v289 = vsub.f32 %v227, %v279
        %v290 = vsub.f32 %v228, %v281
        %v291 = vsub.f32 %v229, %v283
        %v292 = vmul.f32 %v272, %v272
        %v293 = vmul.f32 %v273, %v273
        %v294 = vmul.f32 %v274, %v274
        %v295 = vmul.f32 %v275, %v275
        %v300 = vrot.slane %v292, 1
        %v301 = vrot.slane %v293, 1
        %v302 = vrot.slane %v294, 1
        %v303 = vrot.slane %v295, 1
        %vm308 = vcmask 129024
        %v309 = vsel %vm308, %v300, 0.0
        %v310 = vsel %vm308, %v301, 0.0
        %v311 = vadd.f32 %v309, %v310
        %v312 = vsel %vm308, %v302, 0.0
        %v313 = vadd.f32 %v311, %v312
        %v314 = vsel %vm308, %v303, 0.0
        %v315 = vadd.f32 %v313, %v314
        %316 = vadd.xlane.f32.xlu0 %v315
        %v317 = vpop.xlane.xlu0 %316
        %v318 = vrot.slane %v317, 4
        %v319 = vadd.f32 %v317, %v318
        %v320 = vrot.slane %v319, 2
        %v321 = vadd.f32 %v319, %v320
        %v322 = vrot.slane %v321, 1
        %v323 = vadd.f32 %v321, %v322
        %s324 = vtos %v323
        %s325 = smul.f32 %s324, 5.2083334e-07
        %s326 = sadd.f32 %s259, %s325
        %v327 = vmul.f32 %v288, %v288
        %v328 = vmul.f32 %v289, %v289
        %v329 = vmul.f32 %v290, %v290
        %v330 = vmul.f32 %v291, %v291
        %335 = vrot.lane.b32.xlu0 %v327, 127
        %v336 = vpop.permute.xlu0 %335
        %337 = vrot.lane.b32.xlu0 %v328, 127
        %v338 = vpop.permute.xlu0 %337
        %339 = vrot.lane.b32.xlu0 %v329, 127
        %v340 = vpop.permute.xlu0 %339
        %341 = vrot.lane.b32.xlu0 %v330, 127
        %v342 = vpop.permute.xlu0 %341
        %vm347 = vcmask 121856
        %v348 = vsel %vm347, %v336, 0.0
        %v349 = vsel %vm347, %v338, 0.0
        %v350 = vadd.f32 %v348, %v349
        %v351 = vsel %vm347, %v340, 0.0
        %v352 = vadd.f32 %v350, %v351
        %v353 = vsel %vm347, %v342, 0.0
        %v354 = vadd.f32 %v352, %v353
        %355 = vadd.xlane.f32.xlu0 %v354
        %v356 = vpop.xlane.xlu0 %355
        %v357 = vrot.slane %v356, 4
        %v358 = vadd.f32 %v356, %v357
        %v359 = vrot.slane %v358, 2
        %v360 = vadd.f32 %v358, %v359
        %v361 = vrot.slane %v360, 1
        %v362 = vadd.f32 %v360, %v361
        %s363 = vtos %v362
        %s364 = smul.f32 %s363, 5.2083334e-07
        %s365 = sadd.f32 %s326, %s364
        %v366 = vld [vmem:[#allocation2] sm:$0xf]
        %v368 = vrot.slane %v366, 1
        %v369 = vrot.slane %v366, 2
        %v370 = vrot.slane %v366, 3
        %v375 = vsub.f32 %v226, %v366
        %v376 = vsub.f32 %v227, %v368
        %v377 = vsub.f32 %v228, %v369
        %v378 = vsub.f32 %v229, %v370
        %p379 = scmp.gt.s32.totalorder %s27, 0
        %v380 = vmul.f32 %v375, %v375
        %v381 = vmul.f32 %v376, %v376
        %v382 = vmul.f32 %v377, %v377
        %v383 = vmul.f32 %v378, %v378
        %v388 = vrot.slane %v381, 7
        %vm389 = vcmask 1041409
        %v390 = vsel %vm389, %v388, %v380
        %v391 = vrot.slane %v382, 6
        %vm392 = vcmask 1042434
        %v393 = vsel %vm392, %v391, %v390
        %v394 = vrot.slane %v383, 5
        %vm395 = vcmask 1043459
        %v396 = vsel %vm395, %v394, %v393
        %vm398 = vcmask 125952
        %v399 = vsel %vm398, %v396, 0.0
        %400 = vadd.xlane.f32.xlu0 %v399
        %v401 = vpop.xlane.xlu0 %400
        %v402 = vrot.slane %v401, 4
        %v403 = vadd.f32 %v401, %v402
        %v404 = vrot.slane %v403, 2
        %v405 = vadd.f32 %v403, %v404
        %v406 = vrot.slane %v405, 1
        %v407 = vadd.f32 %v405, %v406
        %s408 = vtos %v407
        %s409 = smul.f32 %s408, 5.2083334e-07
        %s410 = scalar_select %p379, %s409, 0.0
        %s411 = sadd.f32 %s365, %s410
        %v412 = vrot.slane %v228, 6
        %v413 = vsel %vm389, %v412, %v265
        %v414 = vrot.slane %v229, 5
        %v415 = vsel %vm392, %v414, %v413
        %vm418 = vcmask 130055
        %419 = vst.msk [vmem:[#allocation2 - $0x7] sm:$0x80] %vm418, %v226
        %vm420 = vcmask 124928
        %421 = vst.msk [vmem:[#allocation2 + $0x1] sm:$0x7] %vm420, %v415
        %v422 = vsub.f32 %v227, %v226
        %v423 = vsub.f32 %v228, %v227
        %v424 = vsub.f32 %v229, %v228
        %v425 = vmul.f32 %v422, %v422
        %v426 = vmul.f32 %v423, %v423
        %v427 = vmul.f32 %v424, %v424
        %v428 = vsel %vm242, %v425, 0.0
        %v429 = vsel %vm242, %v426, 0.0
        %v430 = vadd.f32 %v428, %v429
        %v431 = vsel %vm242, %v427, 0.0
        %v432 = vadd.f32 %v430, %v431
        %433 = vadd.xlane.f32.xlu0 %v432
        %v434 = vpop.xlane.xlu0 %433
        %v435 = vrot.slane %v434, 4
        %v436 = vadd.f32 %v434, %v435
        %v437 = vrot.slane %v436, 2
        %v438 = vadd.f32 %v436, %v437
        %v439 = vrot.slane %v438, 1
        %v440 = vadd.f32 %v438, %v439
        %s441 = vtos %v440
        %s442 = smul.f32 %s441, 1.3020833e-06
        %s443 = sadd.f32 %s411, %s442
        %v444 = vld [vmem:[%s218] sm:$0x1]
        %v445 = vstv %s443
        %v446 = vadd.f32 %v444, %v445
        %447 = vst [vmem:[%s218] sm:$0x1] %v446
        %s448 = sand.u32 %s98, 1
        %s449 = scalar_lea.sflag [#allocation5], %s448
        %s450 = sand.u32 %s98, 1
        %s451 = scalar_lea.vmem [#allocation8], %s450
        // Predicated region
        $region41: #{tpu_custom_call.1} parent=27 // pred_check
          %p452 = pneg %p108
        $region42: #{tpu_custom_call.1} parent=27 // pred_check_branch
          %454 = sbr.rel (%p452) target = $region44
        $region43: #{tpu_custom_call.1} parent=27 // pred_region
          %s456 = ssub.s32 16, 16
          %457 = vsyncadd %s449, %s456
          %s458 = smul.addr %s26, 16
          %s459 = scalar_lea.hbm %s2, %s458
          %s461 = sshll.u32 %s451, 4
          %s462 = int_to_ptr.vmem [resolvable:$true] %s461
          %464 = dma.vmem_to_hbm [thread:$0]  %s462, 16, %s459, %s449
        $region44: #{tpu_custom_call.1} parent=27 // pred_fallthru
          _
      $region28: #{tpu_custom_call.1} parent=5 // pred_fallthru
        _
      %p465 = scmp.le.s32.totalorder 2, %s17
      // Predicated region
      $region45: #{tpu_custom_call.1} parent=5 // pred_check
        %p466 = pneg %p465
      $region46: #{tpu_custom_call.1} parent=5 // pred_check_branch
        %468 = sbr.rel (%p466) target = $region48
      $region47: #{tpu_custom_call.1} parent=5 // pred_region
        %s469 = ssub.s32 %s17, 2
        // Predicated region
        $region49: #{tpu_custom_call.1} parent=47 // pred_check
          %p470 = pneg %p114
        $region50: #{tpu_custom_call.1} parent=47 // pred_check_branch
          %472 = sbr.rel (%p470) target = $region52
        $region51: #{tpu_custom_call.1} parent=47 // pred_region
          %s473 = sand.u32 %s99, 1
          %s474 = scalar_lea.sflag [#allocation5], %s473
          %s475 = sand.u32 %s99, 1
          %s476 = scalar_lea.vmem [#allocation8], %s475
          %477 = dma.done %s474, 16
        $region52: #{tpu_custom_call.1} parent=47 // pred_fallthru
          _
      $region48: #{tpu_custom_call.1} parent=5 // pred_fallthru
        _
    $region6: #{tpu_custom_call.1} parent=1 // loop_footer
      %s21 = sadd.s32 1, %s17
    $region7: #{tpu_custom_call.1} parent=1 // loop_footer_branch
      %16 = sbr.rel target = $region3
    $region8: #{tpu_custom_call.1} parent=1 // loop_exit
      _
    %478 = vsyncpa [#allocation4], 1
    %s479 = scalar_lea.sflag [#allocation4], 1
    %480 = vsyncpa %s479, 1
    %481 = vsyncpa [#allocation7], 1
    %s482 = scalar_lea.sflag [#allocation7], 1
    %483 = vsyncpa %s482, 1
    %484 = vsyncpa [#allocation5], 1
    %s485 = scalar_lea.sflag [#allocation5], 1
    %486 = vsyncpa %s485, 1

</llo_original>
